<compile_context>
chip_gen: v7x
topology: tpu7x:2x2x1
jax: 0.10.0
libtpu: 0.0.40
codegen_flags: <defaults>
</compile_context>

<pallas_src>
import functools

import jax
import jax.numpy as jnp
from jax.experimental import pallas as pl
from jax.experimental.pallas import tpu as pltpu


def _round_up(x: int, m: int) -> int:
    return (x + m - 1) // m * m


def _gather_rows(idx_ref, table_hbm, dst_buf, sem, token_tile):
    """DMA-gather `token_tile` table rows (indices read from SMEM) into VMEM."""
    base = pl.program_id(0) * token_tile

    @pl.loop(0, token_tile)
    def _start(t):
        row = idx_ref[base + t]                      # SMEM scalar read (before waits)
        pltpu.make_async_copy(
            table_hbm.at[pl.ds(row, 1)], dst_buf.at[pl.ds(t, 1)], sem.at[0]
        ).start()

    @pl.loop(0, token_tile)
    def _wait(t):
        # Dummy src of the same shape: wait only needs the semaphore + size/dst.
        pltpu.make_async_copy(
            table_hbm.at[pl.ds(0, 1)], dst_buf.at[pl.ds(t, 1)], sem.at[0]
        ).wait()


def _embed_proj_kernel(idx_ref, table_hbm, w_ref, out_ref, emb_buf, sem):
    # idx_ref  : (T_pad,)        int32, SMEM (scalar prefetch)
    # table_hbm: (num, dim)      f32,   HBM (pl.ANY)
    # w_ref    : (dim, out_cols) f32,   VMEM-resident (same block every step)
    # out_ref  : (tt, out_cols)  f32
    # emb_buf  : (tt, dim)       f32    scratch (gathered embeddings)
    tt = emb_buf.shape[0]
    _gather_rows(idx_ref, table_hbm, emb_buf, sem, tt)
    out_ref[...] = jnp.dot(
        emb_buf[...], w_ref[...], preferred_element_type=jnp.float32
    ).astype(out_ref.dtype)


def _embed_identity_kernel(idx_ref, table_hbm, out_ref, emb_buf, sem):
    # Identity projection: pure row gather (table pre-padded to lane-dense width).
    tt = emb_buf.shape[0]
    _gather_rows(idx_ref, table_hbm, emb_buf, sem, tt)
    out_ref[...] = emb_buf[...]


@functools.partial(jax.jit, static_argnames=("token_tile",))
def embedding_layer_forward(indexes, table, w_t=None, *, token_tile=256):
    """Pallas forward for EmbeddingLayer.

    indexes: [B, S] int32
    table  : [num, dim] f32
    w_t    : [dim, proj_dim] f32 or None (Identity projection)
    """
    B, S = indexes.shape
    num, dim = table.shape
    T = B * S

    # Big token tiles (few grid steps, full MXU rows), but capped so tiny inputs
    # do not gather far more rows than they need.
    tt = min(token_tile, _round_up(T, 8))
    T_pad = _round_up(T, tt)
    grid = (T_pad // tt,)

    # NOTE: PyTorch nn.Embedding raises on out-of-range indices; here we clamp to
    # guarantee no OOB DMA. Padding tokens gather row 0 and are sliced off below.
    idx = jnp.clip(indexes.reshape(-1).astype(jnp.int32), 0, num - 1)
    idx = jnp.pad(idx, (0, T_pad - T))
    # TODO(synk): for very large T, chunk `idx` at the wrapper level (SMEM scalar-
    # prefetch capacity) instead of prefetching the full flat index array.

    if w_t is not None:
        proj = w_t.shape[1]
        out_cols = _round_up(proj, 128)                # lane-dense output
        w_pad = jnp.pad(w_t, ((0, 0), (0, out_cols - proj)))
        # TODO(synk): tile the projection K/N dims if dim*out_cols*4 exceeds ~16 MiB
        # instead of keeping w_t fully VMEM-resident.
        vmem_est = 4 * (2 * tt * out_cols + 2 * dim * out_cols + tt * dim)
        out = pl.pallas_call(
            _embed_proj_kernel,
            out_shape=jax.ShapeDtypeStruct((T_pad, out_cols), jnp.float32),
            grid_spec=pltpu.PrefetchScalarGridSpec(
                num_scalar_prefetch=1,
                grid=grid,
                in_specs=[
                    pl.BlockSpec(memory_space=pl.ANY),                  # table in HBM
                    pl.BlockSpec((dim, out_cols), lambda i, idx: (0, 0)),
                ],
                out_specs=pl.BlockSpec((tt, out_cols), lambda i, idx: (i, 0)),
                scratch_shapes=[
                    pltpu.VMEM((tt, dim), jnp.float32),
                    pltpu.SemaphoreType.DMA((1,)),
                ],
            ),
            compiler_params=pltpu.CompilerParams(
                dimension_semantics=("parallel",),
                vmem_limit_bytes=int(min(max(4 * vmem_est, 16 << 20), 64 << 20)),
            ),
        )(idx, table, w_pad)
        return out[:T, :proj].reshape(B, S, proj)

    # Identity-projection path: pure gather from a lane-dense-padded table.
    out_cols = _round_up(dim, 128)
    table_pad = jnp.pad(table, ((0, 0), (0, out_cols - dim)))
    vmem_est = 4 * (3 * tt * out_cols)
    out = pl.pallas_call(
        _embed_identity_kernel,
        out_shape=jax.ShapeDtypeStruct((T_pad, out_cols), jnp.float32),
        grid_spec=pltpu.PrefetchScalarGridSpec(
            num_scalar_prefetch=1,
            grid=grid,
            in_specs=[pl.BlockSpec(memory_space=pl.ANY)],               # table in HBM
            out_specs=pl.BlockSpec((tt, out_cols), lambda i, idx: (i, 0)),
            scratch_shapes=[
                pltpu.VMEM((tt, out_cols), jnp.float32),
                pltpu.SemaphoreType.DMA((1,)),
            ],
        ),
        compiler_params=pltpu.CompilerParams(
            dimension_semantics=("parallel",),
            vmem_limit_bytes=int(min(max(4 * vmem_est, 16 << 20), 64 << 20)),
        ),
    )(idx, table_pad)
    return out[:T, :dim].reshape(B, S, dim)


if __name__ == "__main__":
    # Small shapes consistent with the module: vocab, embedding dim, projection
    # dim, and a [B, S] batch of indices.
    NUM, DIM, PROJ = 64, 32, 48
    B, S = 2, 8

    key = jax.random.PRNGKey(0)
    k_tab, k_proj, k_idx = jax.random.split(key, 3)

    # Deterministic parameter init (xavier-normal-like scales, as in .init()).
    emb_init = 0.1
    table = (jax.random.normal(k_tab, (NUM, DIM), jnp.float32)
             * emb_init * (2.0 / (NUM + DIM)) ** 0.5)
    gain = 2.0 ** 0.5  # calculate_gain('relu')
    # PyTorch Linear weight is [proj_dim, dim]; store its transpose for the kernel.
    w_pt = (jax.random.normal(k_proj, (PROJ, DIM), jnp.float32)
            * gain * (2.0 / (DIM + PROJ)) ** 0.5)
    w_t = w_pt.T  # [DIM, PROJ]

    indexes = jax.random.randint(k_idx, (B, S), 0, NUM, dtype=jnp.int32)

    # Pallas kernel (projection path).
    out = embedding_layer_forward(indexes, table, w_t)
    out = jax.block_until_ready(out)

    # Identity-projection path (proj_dim=None).
    out_id = embedding_layer_forward(indexes, table, None)
    out_id = jax.block_until_ready(out_id)

    # Reference check in plain JAX.
    ref = jnp.take(table, indexes.reshape(-1), axis=0).reshape(B, S, DIM)
    ref_proj = ref @ w_t
    assert out.shape == (B, S, PROJ)
    assert out_id.shape == (B, S, DIM)
    assert jnp.allclose(out, ref_proj, atol=1e-5, rtol=1e-5)
    assert jnp.allclose(out_id, ref, atol=1e-6, rtol=1e-6)

    print("KERNEL_OK")
</pallas_src>

<mosaic_0001>
module attributes {stable_mosaic.version = 11 : i64} {
  func.func @_embed_proj_kernel(%arg0: i32, %arg1: memref<16xi32, #tpu.memory_space<smem>>, %arg2: memref<64x32xf32, #tpu.memory_space<any>>, %arg3: memref<32x128xf32, #tpu.memory_space<vmem>>, %arg4: memref<16x128xf32, #tpu.memory_space<vmem>>, %arg5: memref<16x32xf32, #tpu.memory_space<vmem>>, %arg6: memref<1x!tpu.dma_semaphore, #tpu.memory_space<semaphore_mem>>) attributes {dimension_semantics = [#tpu.dimension_semantics<parallel>], iteration_bounds = array<i64: 1>, scalar_prefetch = 1 : i64, scratch_operands = 2 : i64, tpu.core_type = #tpu.core_type<tc>, window_params = [{}, {pipeline_mode = #tpu.pipeline_mode<synchronous>, transform_indices = @transform_1, window_bounds = array<i64: 32, 128>}, {transform_indices = @transform_2, window_bounds = array<i64: 16, 128>}]} {
    %c16_i32 = arith.constant 16 : i32
    %0 = arith.muli %arg0, %c16_i32 : i32
    %c0_i32 = arith.constant 0 : i32
    %c16_i32_0 = arith.constant 16 : i32
    %1 = arith.addi %c0_i32, %c16_i32_0 : i32
    %c1_i32 = arith.constant 1 : i32
    scf.for %arg7 = %c0_i32 to %1 step %c1_i32  : i32 {
      %c1_i32_11 = arith.constant 1 : i32
      %7 = arith.muli %arg7, %c1_i32_11 : i32
      %c0_i32_12 = arith.constant 0 : i32
      %8 = arith.addi %c0_i32_12, %7 : i32
      %9 = arith.addi %0, %8 : i32
      %10 = arith.index_cast %9 : i32 to index
      %11 = memref.load %arg1[%10] : memref<16xi32, #tpu.memory_space<smem>>
      %c0_i32_13 = arith.constant 0 : i32
      %c0_i32_14 = arith.constant 0 : i32
      %12 = tpu.memref_slice %arg2[%11, %c0_i32_14] : memref<64x32xf32, #tpu.memory_space<any>> -> memref<1x32xf32, #tpu.memory_space<any>>
      %c0_i32_15 = arith.constant 0 : i32
      %13 = tpu.memref_slice %arg5[%8, %c0_i32_15] : memref<16x32xf32, #tpu.memory_space<vmem>> -> memref<1x32xf32, #tpu.memory_space<vmem>>
      %14 = tpu.memref_slice %arg6[%c0_i32_13] : memref<1x!tpu.dma_semaphore, #tpu.memory_space<semaphore_mem>> -> memref<1x!tpu.dma_semaphore, #tpu.memory_space<semaphore_mem>>
      %15 = tpu.memref_squeeze %14 : memref<1x!tpu.dma_semaphore, #tpu.memory_space<semaphore_mem>> -> memref<!tpu.dma_semaphore, #tpu.memory_space<semaphore_mem>>
      tpu.enqueue_dma source(%12 : memref<1x32xf32, #tpu.memory_space<any>>) target(%13 : memref<1x32xf32, #tpu.memory_space<vmem>>) target_semaphore(%15 : memref<!tpu.dma_semaphore, #tpu.memory_space<semaphore_mem>>)
    }
    %c16_i32_1 = arith.constant 16 : i32
    %c0_i32_2 = arith.constant 0 : i32
    %c16_i32_3 = arith.constant 16 : i32
    %2 = arith.addi %c0_i32_2, %c16_i32_3 : i32
    %c1_i32_4 = arith.constant 1 : i32
    scf.for %arg7 = %c0_i32_2 to %2 step %c1_i32_4  : i32 {
      %c1_i32_11 = arith.constant 1 : i32
      %7 = arith.muli %arg7, %c1_i32_11 : i32
      %c0_i32_12 = arith.constant 0 : i32
      %8 = arith.addi %c0_i32_12, %7 : i32
      %c0_i32_13 = arith.constant 0 : i32
      %c0_i32_14 = arith.constant 0 : i32
      %c0_i32_15 = arith.constant 0 : i32
      %9 = tpu.memref_slice %arg2[%c0_i32_14, %c0_i32_15] : memref<64x32xf32, #tpu.memory_space<any>> -> memref<1x32xf32, #tpu.memory_space<any>>
      %c0_i32_16 = arith.constant 0 : i32
      %10 = tpu.memref_slice %arg5[%8, %c0_i32_16] : memref<16x32xf32, #tpu.memory_space<vmem>> -> memref<1x32xf32, #tpu.memory_space<vmem>>
      %11 = tpu.memref_slice %arg6[%c0_i32_13] : memref<1x!tpu.dma_semaphore, #tpu.memory_space<semaphore_mem>> -> memref<1x!tpu.dma_semaphore, #tpu.memory_space<semaphore_mem>>
      %12 = tpu.memref_squeeze %11 : memref<1x!tpu.dma_semaphore, #tpu.memory_space<semaphore_mem>> -> memref<!tpu.dma_semaphore, #tpu.memory_space<semaphore_mem>>
      tpu.wait_dma2 semaphore(%12 : memref<!tpu.dma_semaphore, #tpu.memory_space<semaphore_mem>>) src(%9 : memref<1x32xf32, #tpu.memory_space<any>>) dst(%10 : memref<1x32xf32, #tpu.memory_space<vmem>>)
    }
    %c16_i32_5 = arith.constant 16 : i32
    %c0 = arith.constant 0 : index
    %c0_6 = arith.constant 0 : index
    %3 = vector.load %arg5[%c0, %c0_6] : memref<16x32xf32, #tpu.memory_space<vmem>>, vector<16x32xf32>
    %c0_7 = arith.constant 0 : index
    %c0_8 = arith.constant 0 : index
    %4 = vector.load %arg3[%c0_7, %c0_8] : memref<32x128xf32, #tpu.memory_space<vmem>>, vector<32x128xf32>
    %cst = arith.constant dense<0.000000e+00> : vector<16x128xf32>
    %5 = tpu.matmul %3, %4, %cst {dimension_numbers = #tpu.dot_dimension_numbers<[1], [0], [0], [1], [0, 0, 1, 1], [], []>} : vector<16x32xf32>, vector<32x128xf32>, vector<16x128xf32> -> vector<16x128xf32>
    %c0_9 = arith.constant 0 : index
    %c0_10 = arith.constant 0 : index
    %6 = vector.load %arg4[%c0_9, %c0_10] : memref<16x128xf32, #tpu.memory_space<vmem>>, vector<16x128xf32>
    tpu.vector_store %arg4[%c0_9, %c0_10], %5 {strides = array<i32>} : memref<16x128xf32, #tpu.memory_space<vmem>>, vector<16x128xf32>,
    return
  }
  func.func @transform_1(%arg0: i32, %arg1: memref<16xi32, #tpu.memory_space<smem>>) -> (i32, i32) {
    %c0_i32 = arith.constant 0 : i32
    %c0_i32_0 = arith.constant 0 : i32
    %c0_i32_1 = arith.constant 0 : i32
    return %c0_i32, %c0_i32_0 : i32, i32
  }
  func.func @transform_2(%arg0: i32, %arg1: memref<16xi32, #tpu.memory_space<smem>>) -> (i32, i32) {
    %c0_i32 = arith.constant 0 : i32
    %c0_i32_0 = arith.constant 0 : i32
    return %arg0, %c0_i32 : i32, i32
  }
}

</mosaic_0001>

<llo_original>
// kernel: embedding_layer_forward.1
$region0: #{embedding_layer_forward.1}
  #allocation0 [shape = 'u32[]', space=smem, size = 0x4, offset = 0x4, fixed_abs, tag = 'smem constant byte address 0x4 - core index']
  #allocation1 [shape = 'u32[144,128]{1,0:T(1,128)}', space=vmem, size = 0x12000, scoped, tag = 'internal scratch']
  #allocation2 [shape = 'f32[16,32]{1,0:T(8,128)}', space=vmem, size = 0x2000, scoped, tag = 'scratch operand']
  #allocation3 [shape = 's32[1]{0}', space=sflag, size = 0x4, scoped, tag = 'scratch operand']
  #allocation4 [shape = 's32[1]{0}', space=sflag, size = 0x4, scoped, tag = 'scoped memory for embedding_layer_forward.1']
  #allocation5 [shape = 'u8[512]{0}', space=smem, size = 0x200, scoped, tag = 'prefetched SMEM operand 0']
  #allocation6 [shape = 's32[]', space=sflag, size = 0x4, offset = 0, fixed_abs, tag = 'sflag constant byte address 0x0 - dummy sync flag']
  %s0 = inlined_call_operand.vmem [shape: s32[16], index: 0, kind: input, shape index: {}]
  %s1 = inlined_call_operand.vmem [shape: f32[64,32], index: 1, kind: input, shape index: {}]
  %s2 = inlined_call_operand.vmem [shape: f32[32,128], index: 2, kind: input, shape index: {}]
  %s3 = inlined_call_operand.vmem [shape: f32[16,128], index: 3, kind: output, shape index: {}]
  %s4 = sld [smem:[#allocation0]]
  $region58: #{embedding_layer_forward.1} parent=0
    _
  %s6 = ssub.s32 1, %s4
  %s7 = scalar_select 0, %s6, %s4
  %s8 = sshll.u32 %s0, 4
  %s9 = int_to_ptr.vmem [resolvable:$true] %s8
  %11 = dma.vmem_to_smem %s9, 16, [#allocation5], [#allocation4]
  %12 = dma.done [#allocation4], 16
  %13 = sfence
  // Predicated region
  $region2: #{embedding_layer_forward.1} parent=0 // pred_check
    _
  $region3: #{embedding_layer_forward.1} parent=0 // pred_check_branch
    %15 = sbr.rel (0) target = $region5
  $region4: #{embedding_layer_forward.1} parent=0 // pred_region
    _
  $region5: #{embedding_layer_forward.1} parent=0 // pred_fallthru
    _
  %s16 = smul.u32 0, 16
  loop: start=0, step=1, limit=16
  $region6: #{embedding_layer_forward.1} parent=0 // loop_pre_header
    _
  $region7: #{embedding_layer_forward.1} parent=0 // loop_header
    %s18 = sphi 0, %s22
    %p19 = scmp.ge.s32.totalorder %s18, 16
  $region8: #{embedding_layer_forward.1} parent=0 // loop_header_branch
    %21 = sbr.rel (%p19) target = $region12
  $region9: #{embedding_layer_forward.1} parent=0 // loop_body
    %s23 = sadd.s32 %s16, %s18
    %s24 = sld [smem:[#allocation5 + %s23]]
    %s25 = scalar_lea.vmem %s1, %s24
    %s26 = scalar_lea.vmem [#allocation2], %s18
    %p28 = scmp.lt.u32.totalorder 1, 8
    %p29 = pneg %p28
    // Predicated region
    $region13: #{embedding_layer_forward.1} parent=9 // pred_check
      _
    $region14: #{embedding_layer_forward.1} parent=9 // pred_check_branch
      %31 = sbr.rel (%p28) target = $region16
    $region15: #{embedding_layer_forward.1} parent=9 // pred_region
      %s46 = sand.u32 1, 7
      %p47 = scmp.eq.s32.totalorder %s46, 0
      %p48 = pneg %p47
      // Predicated region
      $region28: #{embedding_layer_forward.1} parent=15 // pred_check
        _
      $region29: #{embedding_layer_forward.1} parent=15 // pred_check_branch
        %50 = sbr.rel (%p47) target = $region31
      $region30: #{embedding_layer_forward.1} parent=15 // pred_region
        %s51 = sand.u32 1, 7
        %s52 = ssub.s32 1, %s51
        %s53 = scalar_lea.vmem %s25, %s52
        %s54 = ssub.s32 1, %s51
        %s55 = scalar_lea.vmem %s26, %s54 [#allocation2]
        %s56 = sshllo.u32 0, %s51
        loop: start=0, step=1, limit=1
        $region32: #{embedding_layer_forward.1} parent=30 // loop_pre_header
          _
        $region33: #{embedding_layer_forward.1} parent=30 // loop_header
          %s58 = sphi 0, %s62
          %p59 = scmp.ge.s32.totalorder %s58, 1
          %s63 = sphi %s53, %s53
          %s64 = sphi %s55, %s55
        $region34: #{embedding_layer_forward.1} parent=30 // loop_header_branch
          %61 = sbr.rel (%p59) target = $region38
        $region35: #{embedding_layer_forward.1} parent=30 // loop_body
          %v65 = vld [vmem:[%s63] sm:%s56]
          %66 = vst [vmem:[%s64] sm:%s56] %v65
        $region36: #{embedding_layer_forward.1} parent=30 // loop_footer
          %s62 = sadd.s32 1, %s58
        $region37: #{embedding_layer_forward.1} parent=30 // loop_footer_branch
          %57 = sbr.rel target = $region33
        $region38: #{embedding_layer_forward.1} parent=30 // loop_exit
          _
      $region31: #{embedding_layer_forward.1} parent=15 // pred_fallthru
        _
    $region16: #{embedding_layer_forward.1} parent=9 // pred_fallthru
      _
    // Predicated region
    $region17: #{embedding_layer_forward.1} parent=9 // pred_check
      %p32 = pneg %p28
    $region18: #{embedding_layer_forward.1} parent=9 // pred_check_branch
      %34 = sbr.rel (%p32) target = $region20
    $region19: #{embedding_layer_forward.1} parent=9 // pred_region
      %s35 = sshllo.u32 0, 1
      loop: start=0, step=1, limit=1
      $region21: #{embedding_layer_forward.1} parent=19 // loop_pre_header
        _
      $region22: #{embedding_layer_forward.1} parent=19 // loop_header
        %s37 = sphi 0, %s41
        %p38 = scmp.ge.s32.totalorder %s37, 1
        %s42 = sphi %s25, %s25
        %s43 = sphi %s26, %s26
      $region23: #{embedding_layer_forward.1} parent=19 // loop_header_branch
        %40 = sbr.rel (%p38) target = $region27
      $region24: #{embedding_layer_forward.1} parent=19 // loop_body
        %v44 = vld [vmem:[%s42] sm:%s35]
        %45 = vst [vmem:[%s43] sm:%s35] %v44
      $region25: #{embedding_layer_forward.1} parent=19 // loop_footer
        %s41 = sadd.s32 1, %s37
      $region26: #{embedding_layer_forward.1} parent=19 // loop_footer_branch
        %36 = sbr.rel target = $region22
      $region27: #{embedding_layer_forward.1} parent=19 // loop_exit
        _
    $region20: #{embedding_layer_forward.1} parent=9 // pred_fallthru
      _
    // Predicated region
    $region39: #{embedding_layer_forward.1} parent=9 // pred_check
      _
    $region40: #{embedding_layer_forward.1} parent=9 // pred_check_branch
      %69 = sbr.rel (0) target = $region42
    $region41: #{embedding_layer_forward.1} parent=9 // pred_region
      %70 = vsyncadd [#allocation3], 16
    $region42: #{embedding_layer_forward.1} parent=9 // pred_fallthru
      _
  $region10: #{embedding_layer_forward.1} parent=0 // loop_footer
    %s22 = sadd.s32 1, %s18
  $region11: #{embedding_layer_forward.1} parent=0 // loop_footer_branch
    %17 = sbr.rel target = $region7
  $region12: #{embedding_layer_forward.1} parent=0 // loop_exit
    _
  loop: start=0, step=1, limit=16
  $region43: #{embedding_layer_forward.1} parent=0 // loop_pre_header
    _
  $region44: #{embedding_layer_forward.1} parent=0 // loop_header
    %s72 = sphi 0, %s76
    %p73 = scmp.ge.s32.totalorder %s72, 16
  $region45: #{embedding_layer_forward.1} parent=0 // loop_header_branch
    %75 = sbr.rel (%p73) target = $region49
  $region46: #{embedding_layer_forward.1} parent=0 // loop_body
    %s77 = smul.u32 1, 1
    %s78 = sshll.u32 %s77, 4
    %79 = dma.done [#allocation3], %s78
  $region47: #{embedding_layer_forward.1} parent=0 // loop_footer
    %s76 = sadd.s32 1, %s72
  $region48: #{embedding_layer_forward.1} parent=0 // loop_footer_branch
    %71 = sbr.rel target = $region44
  $region49: #{embedding_layer_forward.1} parent=0 // loop_exit
    _
  %v80 = vld [vmem:[#allocation2] sm:$0xff]
  %v81 = vld [vmem:[#allocation2 + $0x8] sm:$0xff]
  %v82 = vld [vmem:[%s2] sm:$0xff]
  %v83 = vld [vmem:[%s2 + $0x8] sm:$0xff]
  %v84 = vld [vmem:[%s2 + $0x10] sm:$0xff]
  %v85 = vld [vmem:[%s2 + $0x18] sm:$0xff]
  %vm86 = vcmask 261120
  %v88 = vsel %vm86, %v80, 0
  %v91 = vsel %vm86, %v81, 0
  %93 = vmatprep.subr.mxu0 0.0
  %94 = vmatpush1.msra.mxu0 %v82
  %95 = vmatprep.subr.mxu0 0.0
  %96 = vmatpush1.msra.mxu0 %v83
  %97 = vmatprep.subr.mxu0 0.0
  %98 = vmatpush1.msra.mxu0 %v84
  %99 = vmatprep.subr.mxu0 0.0
  %100 = vmatpush1.msra.mxu0 %v85
  %101 = vmatprep.subr.mxu0 0.0
  %102 = vmatpush1.msra.mxu0 0.0
  %103 = vmatprep.subr.mxu0 0.0
  %104 = vmatpush1.msra.mxu0 0.0
  %105 = vmatprep.subr.mxu0 0.0
  %106 = vmatpush1.msra.mxu0 0.0
  %107 = vmatprep.subr.mxu0 0.0
  %108 = vmatpush1.msra.mxu0 0.0
  %109 = vmatprep.subr.mxu0 0.0
  %110 = vmatpush1.msra.mxu0 0.0
  %111 = vmatprep.subr.mxu0 0.0
  %112 = vmatpush1.msra.mxu0 0.0
  %113 = vmatprep.subr.mxu0 0.0
  %114 = vmatpush1.msra.mxu0 0.0
  %115 = vmatprep.subr.mxu0 0.0
  %116 = vmatpush1.msra.mxu0 0.0
  %117 = vmatprep.subr.mxu0 0.0
  %118 = vmatpush1.msra.mxu0 0.0
  %119 = vmatprep.subr.mxu0 0.0
  %120 = vmatpush1.msra.mxu0 0.0
  %121 = vmatprep.subr.mxu0 0.0
  %122 = vmatpush1.msra.mxu0 0.0
  %123 = vmatprep.subr.mxu0 0.0
  %124 = vmatpush1.msra.mxu0 0.0
  %125 = vmatprep.subr.mxu0 0.0
  %126 = vmatpush1.msra.mxu0 0.0
  %127 = vmatprep.subr.mxu0 0.0
  %128 = vmatpush1.msra.mxu0 0.0
  %129 = vmatprep.subr.mxu0 0.0
  %130 = vmatpush1.msra.mxu0 0.0
  %131 = vmatprep.subr.mxu0 0.0
  %132 = vmatpush1.msra.mxu0 0.0
  %133 = vmatprep.subr.mxu0 0.0
  %134 = vmatpush1.msra.mxu0 0.0
  %135 = vmatprep.subr.mxu0 0.0
  %136 = vmatpush1.msra.mxu0 0.0
  %137 = vmatprep.subr.mxu0 0.0
  %138 = vmatpush1.msra.mxu0 0.0
  %139 = vmatprep.subr.mxu0 0.0
  %140 = vmatpush1.msra.mxu0 0.0
  %141 = vmatprep.subr.mxu0 0.0
  %142 = vmatpush1.msra.mxu0 0.0
  %143 = vmatprep.subr.mxu0 0.0
  %144 = vmatpush1.msra.mxu0 0.0
  %145 = vmatprep.subr.mxu0 0.0
  %146 = vmatpush1.msra.mxu0 0.0
  %147 = vmatprep.subr.mxu0 0.0
  %148 = vmatpush1.msra.mxu0 0.0
  %149 = vmatprep.subr.mxu0 0.0
  %150 = vmatpush1.msra.mxu0 0.0
  %151 = vmatprep.subr.mxu0 0.0
  %152 = vmatpush1.msra.mxu0 0.0
  %153 = vmatprep.subr.mxu0 0.0
  %154 = vmatpush1.msra.mxu0 0.0
  %155 = vmatprep.subr.mxu0 0.0
  %156 = vmatpush1.msra.mxu0 0.0
  %157 = vmatprep.mubr.f32.mxu0 0.0
  %158 = vmatmul.mubr.f32.gmra.mrb[0].mxu0 %v88
  %v159 = vpop.f32.mrb[0].mxu0
  %v160 = vadd.f32 0.0, %v159
  %v161 = vpop.f32.mrb[0].mxu0
  %162 = vmatprep.mubr.f32.mxu0 0.0
  %163 = vmatmul.mubr.f32.gmra.mrb[0].mxu0 %v91
  %v164 = vpop.f32.mrb[0].mxu0
  %v165 = vadd.f32 0.0, %v164
  %v166 = vpop.f32.mrb[0].mxu0
  %167 = vdwg.mxu0
  %168 = vst [vmem:[%s3] sm:$0xff] %v160
  %169 = vst [vmem:[%s3 + $0x8] sm:$0xff] %v165
  // Predicated region
  $region50: #{embedding_layer_forward.1} parent=0 // pred_check
    _
  $region51: #{embedding_layer_forward.1} parent=0 // pred_check_branch
    %171 = sbr.rel (0) target = $region53
  $region52: #{embedding_layer_forward.1} parent=0 // pred_region
    _
  $region53: #{embedding_layer_forward.1} parent=0 // pred_fallthru
    _
  // Predicated region
  $region54: #{embedding_layer_forward.1} parent=0 // pred_check
    _
  $region55: #{embedding_layer_forward.1} parent=0 // pred_check_branch
    %173 = sbr.rel (0) target = $region57
  $region56: #{embedding_layer_forward.1} parent=0 // pred_region
    _
  $region57: #{embedding_layer_forward.1} parent=0 // pred_fallthru
    _
  %174 = vsyncmov [#allocation3]
  %s175 = vpop.sfrf %174
  %p176 = scmp.eq.s32.totalorder %s175, 0
  %p177 = pneg %p176
  %179 = shalt.err (%p177)

</llo_original>
